<compile_context>
chip_gen: v7x
topology: tpu7x:2x2x1
jax: 0.10.0
libtpu: 0.0.40
codegen_flags: <defaults>
</compile_context>

<pallas_src>
import math
from functools import partial

import jax
import jax.numpy as jnp
from jax.experimental import pallas as pl
from jax.experimental.pallas import tpu as pltpu


# ------------------------------ Pallas kernel ------------------------------- #

def _fused_self_attn_kernel(x_ref, wqkv_ref, bqkv_ref, wproj_ref, bproj_ref,
                            o_ref, attn_ref, *, n_heads, head_size):
    """One batch row per grid step.

    x_ref     : (1, S, H)   input block (compute dtype)
    wqkv_ref  : (H, 3H)     pre-transposed, pre-scaled QKV weight (compute dtype)
    bqkv_ref  : (1, 3H)     pre-scaled QKV bias (f32)
    wproj_ref : (H, H)      pre-transposed output-projection weight (compute dtype)
    bproj_ref : (1, H)      output-projection bias (f32)
    o_ref     : (1, S, H)   output block
    attn_ref  : (S, H)      VMEM scratch for merged heads (compute dtype)
    """
    H = n_heads * head_size
    Dh = head_size

    w_qkv = wqkv_ref[...]                      # (H, 3H)
    cdt = w_qkv.dtype                          # compute dtype (bf16 or f32)
    x = x_ref[0]                               # (S, H)
    S = x.shape[0]

    # ---- QKV projection: compute-dtype MXU operands, f32 accumulation + bias.
    #      1/sqrt(Dh) already folded into the q columns of W / q section of b.
    qkv = jnp.dot(x.astype(cdt), w_qkv,
                  preferred_element_type=jnp.float32) + bqkv_ref[...]   # (S, 3H) f32
    qkv_c = qkv.astype(cdt)                    # MXU operand dtype for attention

    # ---- head split -> (n_heads, S, Dh): stack static lane slices along a NEW
    #      LEADING axis (cheap major-dim stack, no lane-dim concat).
    def heads(base):
        return jnp.stack(
            [qkv_c[:, base + h * Dh: base + (h + 1) * Dh] for h in range(n_heads)],
            axis=0)

    q = heads(0)          # (nh, S, Dh)
    k = heads(H)
    v = heads(2 * H)

    # ---- batched q.k^T over heads (contract Dh), f32 scores ----
    s = jnp.einsum("hqd,hkd->hqk", q, k,
                   preferred_element_type=jnp.float32)                  # (nh, S, S)

    row = jax.lax.broadcasted_iota(jnp.int32, (S, S), 0)
    col = jax.lax.broadcasted_iota(jnp.int32, (S, S), 1)
    causal = (col <= row)[None]                                         # (1, S, S)
    s = jnp.where(causal, s, -1e30)            # large finite negative (NaN-safe)

    # ---- softmax entirely in f32 (v5e has no bf16 VPU/EUP) ----
    m = jnp.max(s, axis=-1, keepdims=True)
    p = jnp.exp(s - m)
    denom = jnp.sum(p, axis=-1, keepdims=True)
    inv = pl.reciprocal(denom, approx=True)    # EUP slot, ~free (~1e-4 rel err)
    p = (p * inv).astype(cdt)                  # probabilities as MXU operand dtype

    # ---- batched p.v over heads ----
    o = jnp.einsum("hqk,hkd->hqd", p, v,
                   preferred_element_type=jnp.float32)                  # (nh, S, Dh)

    # ---- merge heads into VMEM scratch at static lane offsets (no concat) ----
    for h in range(n_heads):
        attn_ref[:, h * Dh:(h + 1) * Dh] = o[h].astype(attn_ref.dtype)

    # ---- output projection ----
    out = jnp.dot(attn_ref[...], wproj_ref[...],
                  preferred_element_type=jnp.float32) + bproj_ref[...]  # (S, H) f32
    o_ref[0] = out.astype(o_ref.dtype)


# ------------------------------ JAX wrappers -------------------------------- #

def prepare_params(torch_layout_params, n_attn_heads, compute_dtype=jnp.bfloat16):
    """One-time host-side weight prep (outside the per-call hot path):
       - transpose torch-layout weights,
       - fold 1/sqrt(head_size) into the q rows of Wqkv and the q bias,
       - cast matmul weights to the compute (MXU operand) dtype; keep biases f32.
    """
    w_qkv = jnp.asarray(torch_layout_params["w_qkv"], jnp.float32)    # (3H, H)
    b_qkv = jnp.asarray(torch_layout_params["b_qkv"], jnp.float32)    # (3H,)
    w_proj = jnp.asarray(torch_layout_params["w_proj"], jnp.float32)  # (H, H)
    b_proj = jnp.asarray(torch_layout_params["b_proj"], jnp.float32)  # (H,)

    H = w_proj.shape[0]
    head_size = H // n_attn_heads
    scale = 1.0 / math.sqrt(head_size)
    scale_vec = jnp.concatenate([jnp.full((H,), scale, jnp.float32),
                                 jnp.ones((2 * H,), jnp.float32)])     # scale q only
    w_qkv = w_qkv * scale_vec[:, None]
    b_qkv = b_qkv * scale_vec

    return {
        "w_qkv_t": w_qkv.T.astype(compute_dtype),    # (H, 3H)
        "b_qkv":   b_qkv.reshape(1, -1),             # (1, 3H), f32
        "w_proj_t": w_proj.T.astype(compute_dtype),  # (H, H)
        "b_proj":  b_proj.reshape(1, -1),            # (1, H), f32
    }


def self_attention_forward(x, prepared, n_attn_heads, *,
                           vmem_limit_bytes=64 * 1024 * 1024,
                           single_buffer_weights=False):
    """Mirrors SelfAttention.forward(x, mask=None, cache=None, use_cache=False)."""
    B, S, H = x.shape
    head_size = H // n_attn_heads
    cdt = prepared["w_qkv_t"].dtype
    x_c = x.astype(cdt)                       # halves x DMA traffic for bf16

    def w_spec(shape):
        if single_buffer_weights:
            # Constant-index resident weights: double-buffering them is pure VMEM
            # waste at production H (binding resource on v7x's 64 MiB VMEM).
            return pl.BlockSpec(shape, lambda b: (0,) * len(shape),
                                pipeline_mode=pl.Buffered(1))
        return pl.BlockSpec(shape, lambda b: (0,) * len(shape))

    out = pl.pallas_call(
        partial(_fused_self_attn_kernel,
                n_heads=n_attn_heads, head_size=head_size),
        out_shape=jax.ShapeDtypeStruct((B, S, H), x.dtype),
        grid_spec=pltpu.PrefetchScalarGridSpec(
            num_scalar_prefetch=0,
            grid=(B,),
            in_specs=[
                pl.BlockSpec((1, S, H), lambda b: (b, 0, 0)),   # x
                w_spec((H, 3 * H)),                             # Wqkv^T (resident)
                w_spec((1, 3 * H)),                             # bqkv
                w_spec((H, H)),                                 # Wproj^T (resident)
                w_spec((1, H)),                                 # bproj
            ],
            out_specs=pl.BlockSpec((1, S, H), lambda b: (b, 0, 0)),
            scratch_shapes=[pltpu.VMEM((S, H), cdt)],           # merged-heads scratch
        ),
        compiler_params=pltpu.CompilerParams(
            dimension_semantics=("parallel",),        # megacore shards batches (v7x)
            vmem_limit_bytes=vmem_limit_bytes,        # default scoped limit is small
        ),
    )(x_c, prepared["w_qkv_t"], prepared["b_qkv"],
      prepared["w_proj_t"], prepared["b_proj"])

    return out, None  # cache is None when use_cache=False


# ------------------------------- reference ---------------------------------- #

def reference_forward(x, torch_params, n_attn_heads):
    B, S, H = x.shape
    Dh = H // n_attn_heads
    qkv = jnp.einsum("bsh,oh->bso", x, torch_params["w_qkv"]) + torch_params["b_qkv"]
    q, k, v = jnp.split(qkv, 3, axis=2)

    def to_heads(t):
        return t.reshape(B, S, n_attn_heads, Dh).transpose(0, 2, 1, 3)

    q, k, v = to_heads(q), to_heads(k), to_heads(v)
    s = jnp.einsum("bhqd,bhkd->bhqk", q, k) / math.sqrt(Dh)
    causal = jnp.tril(jnp.ones((S, S), dtype=bool))
    s = jnp.where(causal[None, None], s, -jnp.inf)
    p = jax.nn.softmax(s, axis=-1)
    o = jnp.einsum("bhqk,bhkd->bhqd", p, v)
    o = o.transpose(0, 2, 1, 3).reshape(B, S, H)
    return jnp.einsum("bsh,oh->bso", o, torch_params["w_proj"]) + torch_params["b_proj"]


# --------------------------------- main -------------------------------------- #

if __name__ == "__main__":
    # Small config: hidden_size=32, n_attn_heads=4, seq=8, batch=2, add_qkv_bias=True
    B, S, H, NH = 2, 8, 32, 4

    key = jax.random.PRNGKey(0)
    kx, k1, k2, k3, k4 = jax.random.split(key, 5)

    # Deterministic parameter init (torch nn.Linear-style uniform bounds), torch layout.
    bound = 1.0 / math.sqrt(H)
    torch_params = {
        "w_qkv": jax.random.uniform(k1, (3 * H, H), jnp.float32, -bound, bound),
        "b_qkv": jax.random.uniform(k2, (3 * H,), jnp.float32, -bound, bound),
        "w_proj": jax.random.uniform(k3, (H, H), jnp.float32, -bound, bound),
        "b_proj": jax.random.uniform(k4, (H,), jnp.float32, -bound, bound),
    }
    x = jax.random.normal(kx, (B, S, H), jnp.float32)
    ref = reference_forward(x, torch_params, NH)

    # --- exact path: f32 MXU operands (matches torch f32 eval semantics) ---
    prepared_f32 = prepare_params(torch_params, NH, compute_dtype=jnp.float32)
    out_f32, cache = self_attention_forward(x, prepared_f32, NH)
    out_f32 = jax.block_until_ready(out_f32)
    assert out_f32.shape == (B, S, H)
    assert cache is None
    # Tolerance relaxed slightly vs 1e-4 because the softmax denominator uses the
    # EUP approximate reciprocal (~1e-4 relative error).
    assert jnp.allclose(out_f32, ref, atol=2e-3, rtol=2e-3), "f32 path mismatch"

    # --- fast path: bf16 MXU operands, f32 accumulation & f32 softmax ---
    prepared_bf16 = prepare_params(torch_params, NH, compute_dtype=jnp.bfloat16)
    out_bf16, _ = self_attention_forward(x, prepared_bf16, NH)
    out_bf16 = jax.block_until_ready(out_bf16)
    assert out_bf16.shape == (B, S, H)
    assert jnp.allclose(out_bf16, ref, atol=5e-2, rtol=5e-2), "bf16 path mismatch"

    print("KERNEL_OK")
</pallas_src>

<mosaic_0001>
module attributes {stable_mosaic.version = 11 : i64} {
  func.func @_fused_self_attn_kernel(%arg0: i32, %arg1: memref<1x8x32xf32, #tpu.memory_space<vmem>>, %arg2: memref<32x96xf32, #tpu.memory_space<vmem>>, %arg3: memref<1x96xf32, #tpu.memory_space<vmem>>, %arg4: memref<32x32xf32, #tpu.memory_space<vmem>>, %arg5: memref<1x32xf32, #tpu.memory_space<vmem>>, %arg6: memref<1x8x32xf32, #tpu.memory_space<vmem>>, %arg7: memref<8x32xf32, #tpu.memory_space<vmem>>) attributes {dimension_semantics = [#tpu.dimension_semantics<parallel>], iteration_bounds = array<i64: 2>, scalar_prefetch = 0 : i64, scratch_operands = 1 : i64, tpu.core_type = #tpu.core_type<tc>, window_params = [{transform_indices = @transform_0, window_bounds = array<i64: 1, 8, 32>}, {pipeline_mode = #tpu.pipeline_mode<synchronous>, transform_indices = @transform_1, window_bounds = array<i64: 32, 96>}, {pipeline_mode = #tpu.pipeline_mode<synchronous>, transform_indices = @transform_2, window_bounds = array<i64: 1, 96>}, {pipeline_mode = #tpu.pipeline_mode<synchronous>, transform_indices = @transform_3, window_bounds = array<i64: 32, 32>}, {pipeline_mode = #tpu.pipeline_mode<synchronous>, transform_indices = @transform_4, window_bounds = array<i64: 1, 32>}, {transform_indices = @transform_5, window_bounds = array<i64: 1, 8, 32>}]} {
    %c0 = arith.constant 0 : index
    %c0_0 = arith.constant 0 : index
    %0 = vector.load %arg2[%c0, %c0_0] : memref<32x96xf32, #tpu.memory_space<vmem>>, vector<32x96xf32>
    %c0_1 = arith.constant 0 : index
    %c0_2 = arith.constant 0 : index
    %c0_3 = arith.constant 0 : index
    %1 = vector.load %arg1[%c0_1, %c0_2, %c0_3] : memref<1x8x32xf32, #tpu.memory_space<vmem>>, vector<1x8x32xf32>
    %2 = vector.shape_cast %1 : vector<1x8x32xf32> to vector<8x32xf32>
    %cst = arith.constant dense<0.000000e+00> : vector<8x96xf32>
    %3 = tpu.matmul %2, %0, %cst {dimension_numbers = #tpu.dot_dimension_numbers<[1], [0], [0], [1], [0, 0, 1, 1], [], []>} : vector<8x32xf32>, vector<32x96xf32>, vector<8x96xf32> -> vector<8x96xf32>
    %c0_4 = arith.constant 0 : index
    %c0_5 = arith.constant 0 : index
    %4 = vector.load %arg3[%c0_4, %c0_5] : memref<1x96xf32, #tpu.memory_space<vmem>>, vector<1x96xf32>
    %5 = vector.broadcast %4 : vector<1x96xf32> to vector<8x96xf32>
    %6 = arith.addf %3, %5 : vector<8x96xf32>
    %7 = vector.extract_strided_slice %6 {offsets = [0, 0], sizes = [8, 8], strides = [1, 1]} : vector<8x96xf32> to vector<8x8xf32>
    %8 = vector.extract_strided_slice %6 {offsets = [0, 8], sizes = [8, 8], strides = [1, 1]} : vector<8x96xf32> to vector<8x8xf32>
    %9 = vector.extract_strided_slice %6 {offsets = [0, 16], sizes = [8, 8], strides = [1, 1]} : vector<8x96xf32> to vector<8x8xf32>
    %10 = vector.extract_strided_slice %6 {offsets = [0, 24], sizes = [8, 8], strides = [1, 1]} : vector<8x96xf32> to vector<8x8xf32>
    %11 = vector.shape_cast %7 : vector<8x8xf32> to vector<1x8x8xf32>
    %12 = vector.shape_cast %8 : vector<8x8xf32> to vector<1x8x8xf32>
    %13 = vector.shape_cast %9 : vector<8x8xf32> to vector<1x8x8xf32>
    %14 = vector.shape_cast %10 : vector<8x8xf32> to vector<1x8x8xf32>
    %15 = tpu.concatenate %11, %12, %13, %14 in 0 : vector<1x8x8xf32>, vector<1x8x8xf32>, vector<1x8x8xf32>, vector<1x8x8xf32> -> vector<4x8x8xf32>
    %16 = vector.extract_strided_slice %6 {offsets = [0, 32], sizes = [8, 8], strides = [1, 1]} : vector<8x96xf32> to vector<8x8xf32>
    %17 = vector.extract_strided_slice %6 {offsets = [0, 40], sizes = [8, 8], strides = [1, 1]} : vector<8x96xf32> to vector<8x8xf32>
    %18 = vector.extract_strided_slice %6 {offsets = [0, 48], sizes = [8, 8], strides = [1, 1]} : vector<8x96xf32> to vector<8x8xf32>
    %19 = vector.extract_strided_slice %6 {offsets = [0, 56], sizes = [8, 8], strides = [1, 1]} : vector<8x96xf32> to vector<8x8xf32>
    %20 = vector.shape_cast %16 : vector<8x8xf32> to vector<1x8x8xf32>
    %21 = vector.shape_cast %17 : vector<8x8xf32> to vector<1x8x8xf32>
    %22 = vector.shape_cast %18 : vector<8x8xf32> to vector<1x8x8xf32>
    %23 = vector.shape_cast %19 : vector<8x8xf32> to vector<1x8x8xf32>
    %24 = tpu.concatenate %20, %21, %22, %23 in 0 : vector<1x8x8xf32>, vector<1x8x8xf32>, vector<1x8x8xf32>, vector<1x8x8xf32> -> vector<4x8x8xf32>
    %25 = vector.extract_strided_slice %6 {offsets = [0, 64], sizes = [8, 8], strides = [1, 1]} : vector<8x96xf32> to vector<8x8xf32>
    %26 = vector.extract_strided_slice %6 {offsets = [0, 72], sizes = [8, 8], strides = [1, 1]} : vector<8x96xf32> to vector<8x8xf32>
    %27 = vector.extract_strided_slice %6 {offsets = [0, 80], sizes = [8, 8], strides = [1, 1]} : vector<8x96xf32> to vector<8x8xf32>
    %28 = vector.extract_strided_slice %6 {offsets = [0, 88], sizes = [8, 8], strides = [1, 1]} : vector<8x96xf32> to vector<8x8xf32>
    %29 = vector.shape_cast %25 : vector<8x8xf32> to vector<1x8x8xf32>
    %30 = vector.shape_cast %26 : vector<8x8xf32> to vector<1x8x8xf32>
    %31 = vector.shape_cast %27 : vector<8x8xf32> to vector<1x8x8xf32>
    %32 = vector.shape_cast %28 : vector<8x8xf32> to vector<1x8x8xf32>
    %33 = tpu.concatenate %29, %30, %31, %32 in 0 : vector<1x8x8xf32>, vector<1x8x8xf32>, vector<1x8x8xf32>, vector<1x8x8xf32> -> vector<4x8x8xf32>
    "tpu.trace_start"() <{level = 10 : i32, message = "hqd,hkd->hqk"}> : () -> ()
    %cst_6 = arith.constant dense<0.000000e+00> : vector<4x8x8xf32>
    %34 = tpu.matmul %15, %24, %cst_6 {dimension_numbers = #tpu.dot_dimension_numbers<[2], [2], [1], [1], [0, 0, 0, 1, 1, 1], [0], [0]>} : vector<4x8x8xf32>, vector<4x8x8xf32>, vector<4x8x8xf32> -> vector<4x8x8xf32>
    "tpu.trace_stop"() : () -> ()
    %35 = tpu.iota {dimensions = array<i32: 0>} : vector<8x8xi32>
    %36 = tpu.iota {dimensions = array<i32: 1>} : vector<8x8xi32>
    %37 = arith.cmpi sle, %36, %35 : vector<8x8xi32>
    %38 = vector.shape_cast %37 : vector<8x8xi1> to vector<1x8x8xi1>
    %cst_7 = arith.constant -1.000000e+30 : f32
    %39 = vector.shape_cast %38 : vector<1x8x8xi1> to vector<1x8x8xi1>
    %40 = vector.broadcast %39 : vector<1x8x8xi1> to vector<4x8x8xi1>
    %41 = vector.broadcast %cst_7 : f32 to vector<4x8x8xf32>
    %42 = arith.select %40, %34, %41 : vector<4x8x8xi1>, vector<4x8x8xf32>
    %cst_8 = arith.constant dense<0xFF800000> : vector<4x8xf32>
    %43 = vector.multi_reduction <maximumf>, %42, %cst_8 [2] : vector<4x8x8xf32> to vector<4x8xf32>
    %44 = vector.shape_cast %43 : vector<4x8xf32> to vector<4x8x1xf32>
    %45 = vector.broadcast %44 : vector<4x8x1xf32> to vector<4x8x8xf32>
    %46 = arith.subf %42, %45 : vector<4x8x8xf32>
    %47 = math.exp %46 : vector<4x8x8xf32>
    %cst_9 = arith.constant dense<0.000000e+00> : vector<4x8xf32>
    %48 = vector.multi_reduction <add>, %47, %cst_9 [2] : vector<4x8x8xf32> to vector<4x8xf32>
    %49 = vector.shape_cast %48 : vector<4x8xf32> to vector<4x8x1xf32>
    %50 = tpu.reciprocal %49 {approx = true} : vector<4x8x1xf32> -> vector<4x8x1xf32>
    %51 = vector.broadcast %50 : vector<4x8x1xf32> to vector<4x8x8xf32>
    %52 = arith.mulf %47, %51 : vector<4x8x8xf32>
    "tpu.trace_start"() <{level = 10 : i32, message = "hqk,hkd->hqd"}> : () -> ()
    %cst_10 = arith.constant dense<0.000000e+00> : vector<4x8x8xf32>
    %53 = tpu.matmul %52, %33, %cst_10 {dimension_numbers = #tpu.dot_dimension_numbers<[2], [1], [1], [2], [0, 0, 0, 1, 1, 2], [0], [0]>} : vector<4x8x8xf32>, vector<4x8x8xf32>, vector<4x8x8xf32> -> vector<4x8x8xf32>
    "tpu.trace_stop"() : () -> ()
    %54 = vector.extract_strided_slice %53 {offsets = [0, 0, 0], sizes = [1, 8, 8], strides = [1, 1, 1]} : vector<4x8x8xf32> to vector<1x8x8xf32>
    %55 = vector.shape_cast %54 : vector<1x8x8xf32> to vector<8x8xf32>
    %c0_11 = arith.constant 0 : index
    %c0_12 = arith.constant 0 : index
    %56 = vector.load %arg7[%c0_11, %c0_12] : memref<8x32xf32, #tpu.memory_space<vmem>>, vector<8x8xf32>
    tpu.vector_store %arg7[%c0_11, %c0_12], %55 {strides = array<i32>} : memref<8x32xf32, #tpu.memory_space<vmem>>, vector<8x8xf32>,
    %57 = vector.extract_strided_slice %53 {offsets = [1, 0, 0], sizes = [1, 8, 8], strides = [1, 1, 1]} : vector<4x8x8xf32> to vector<1x8x8xf32>
    %58 = vector.shape_cast %57 : vector<1x8x8xf32> to vector<8x8xf32>
    %c0_13 = arith.constant 0 : index
    %c8 = arith.constant 8 : index
    %59 = vector.load %arg7[%c0_13, %c8] : memref<8x32xf32, #tpu.memory_space<vmem>>, vector<8x8xf32>
    tpu.vector_store %arg7[%c0_13, %c8], %58 {strides = array<i32>} : memref<8x32xf32, #tpu.memory_space<vmem>>, vector<8x8xf32>,
    %60 = vector.extract_strided_slice %53 {offsets = [2, 0, 0], sizes = [1, 8, 8], strides = [1, 1, 1]} : vector<4x8x8xf32> to vector<1x8x8xf32>
    %61 = vector.shape_cast %60 : vector<1x8x8xf32> to vector<8x8xf32>
    %c0_14 = arith.constant 0 : index
    %c16 = arith.constant 16 : index
    %62 = vector.load %arg7[%c0_14, %c16] : memref<8x32xf32, #tpu.memory_space<vmem>>, vector<8x8xf32>
    tpu.vector_store %arg7[%c0_14, %c16], %61 {strides = array<i32>} : memref<8x32xf32, #tpu.memory_space<vmem>>, vector<8x8xf32>,
    %63 = vector.extract_strided_slice %53 {offsets = [3, 0, 0], sizes = [1, 8, 8], strides = [1, 1, 1]} : vector<4x8x8xf32> to vector<1x8x8xf32>
    %64 = vector.shape_cast %63 : vector<1x8x8xf32> to vector<8x8xf32>
    %c0_15 = arith.constant 0 : index
    %c24 = arith.constant 24 : index
    %65 = vector.load %arg7[%c0_15, %c24] : memref<8x32xf32, #tpu.memory_space<vmem>>, vector<8x8xf32>
    tpu.vector_store %arg7[%c0_15, %c24], %64 {strides = array<i32>} : memref<8x32xf32, #tpu.memory_space<vmem>>, vector<8x8xf32>,
    %c0_16 = arith.constant 0 : index
    %c0_17 = arith.constant 0 : index
    %66 = vector.load %arg7[%c0_16, %c0_17] : memref<8x32xf32, #tpu.memory_space<vmem>>, vector<8x32xf32>
    %c0_18 = arith.constant 0 : index
    %c0_19 = arith.constant 0 : index
    %67 = vector.load %arg4[%c0_18, %c0_19] : memref<32x32xf32, #tpu.memory_space<vmem>>, vector<32x32xf32>
    %cst_20 = arith.constant dense<0.000000e+00> : vector<8x32xf32>
    %68 = tpu.matmul %66, %67, %cst_20 {dimension_numbers = #tpu.dot_dimension_numbers<[1], [0], [0], [1], [0, 0, 1, 1], [], []>} : vector<8x32xf32>, vector<32x32xf32>, vector<8x32xf32> -> vector<8x32xf32>
    %c0_21 = arith.constant 0 : index
    %c0_22 = arith.constant 0 : index
    %69 = vector.load %arg5[%c0_21, %c0_22] : memref<1x32xf32, #tpu.memory_space<vmem>>, vector<1x32xf32>
    %70 = vector.broadcast %69 : vector<1x32xf32> to vector<8x32xf32>
    %71 = arith.addf %68, %70 : vector<8x32xf32>
    %c0_23 = arith.constant 0 : index
    %c0_24 = arith.constant 0 : index
    %c0_25 = arith.constant 0 : index
    %72 = vector.load %arg6[%c0_23, %c0_24, %c0_25] : memref<1x8x32xf32, #tpu.memory_space<vmem>>, vector<1x8x32xf32>
    %73 = vector.shape_cast %72 : vector<1x8x32xf32> to vector<8x32xf32>
    %74 = vector.shape_cast %71 : vector<8x32xf32> to vector<1x8x32xf32>
    tpu.vector_store %arg6[%c0_23, %c0_24, %c0_25], %74 {strides = array<i32>} : memref<1x8x32xf32, #tpu.memory_space<vmem>>, vector<1x8x32xf32>,
    return
  }
  func.func @transform_0(%arg0: i32) -> (i32, i32, i32) {
    %c0_i32 = arith.constant 0 : i32
    %c0_i32_0 = arith.constant 0 : i32
    %c0_i32_1 = arith.constant 0 : i32
    return %arg0, %c0_i32, %c0_i32_0 : i32, i32, i32
  }
  func.func @transform_1(%arg0: i32) -> (i32, i32) {
    %c0_i32 = arith.constant 0 : i32
    %c0_i32_0 = arith.constant 0 : i32
    %c0_i32_1 = arith.constant 0 : i32
    return %c0_i32, %c0_i32_0 : i32, i32
  }
  func.func @transform_2(%arg0: i32) -> (i32, i32) {
    %c0_i32 = arith.constant 0 : i32
    %c0_i32_0 = arith.constant 0 : i32
    %c0_i32_1 = arith.constant 0 : i32
    return %c0_i32, %c0_i32_0 : i32, i32
  }
  func.func @transform_3(%arg0: i32) -> (i32, i32) {
    %c0_i32 = arith.constant 0 : i32
    %c0_i32_0 = arith.constant 0 : i32
    %c0_i32_1 = arith.constant 0 : i32
    return %c0_i32, %c0_i32_0 : i32, i32
  }
  func.func @transform_4(%arg0: i32) -> (i32, i32) {
    %c0_i32 = arith.constant 0 : i32
    %c0_i32_0 = arith.constant 0 : i32
    %c0_i32_1 = arith.constant 0 : i32
    return %c0_i32, %c0_i32_0 : i32, i32
  }
  func.func @transform_5(%arg0: i32) -> (i32, i32, i32) {
    %c0_i32 = arith.constant 0 : i32
    %c0_i32_0 = arith.constant 0 : i32
    %c0_i32_1 = arith.constant 0 : i32
    return %arg0, %c0_i32, %c0_i32_0 : i32, i32, i32
  }
}

</mosaic_0001>

<llo_original>
// kernel: tpu_custom_call.1
$region0: #{tpu_custom_call.1}
  #allocation0 [shape = 'u32[]', space=smem, size = 0x4, offset = 0x4, fixed_abs, tag = 'smem constant byte address 0x4 - core index']
  #allocation1 [shape = 'u32[144,128]{1,0:T(1,128)}', space=vmem, size = 0x12000, scoped, tag = 'internal scratch']
  #allocation2 [shape = 'f32[8,32]{1,0:T(8,128)}', space=vmem, size = 0x1000, scoped, tag = 'scratch operand']
  %s0 = inlined_call_operand.hbm [shape: f32[2,8,32], index: 0, kind: input, shape index: {}]
  %s1 = inlined_call_operand.hbm [shape: f32[32,96], index: 1, kind: input, shape index: {}]
  %s2 = inlined_call_operand.hbm [shape: f32[1,96], index: 2, kind: input, shape index: {}]
  %s3 = inlined_call_operand.hbm [shape: f32[32,32], index: 3, kind: input, shape index: {}]
  %s4 = inlined_call_operand.hbm [shape: f32[1,32], index: 4, kind: input, shape index: {}]
  %s5 = inlined_call_operand.hbm [shape: f32[2,8,32], index: 5, kind: output, shape index: {}]
  %s6 = sld [smem:[#allocation0]]
  $region73: #{tpu_custom_call.1} parent=0
    _
  %s8 = ssub.s32 1, %s6
  %s9 = scalar_select 0, %s8, %s6
  $region1: #{tpu_custom_call.1} parent=0
    #allocation3 [shape = 'u8[8192]{0}', space=vmem, size = 0x2000, scoped, tag = 'input window, operand 0']
    #allocation4 [shape = 's32[2]{0}', space=sflag, size = 0x8, scoped, tag = 'scoped memory for tpu_custom_call.1']
    #allocation5 [shape = 's32[2]{0}', space=sflag, size = 0x8, scoped, tag = 'scoped memory for tpu_custom_call.1']
    #allocation6 [shape = 'u8[16384]{0}', space=vmem, size = 0x4000, scoped, tag = 'input window, operand 1, single buffered']
    #allocation7 [shape = 's32[1]{0}', space=sflag, size = 0x4, scoped, tag = 'scoped memory for tpu_custom_call.1']
    #allocation8 [shape = 'u8[512]{0}', space=vmem, size = 0x400, scoped, tag = 'input window, operand 2, single buffered']
    #allocation9 [shape = 'u8[16384]{0}', space=vmem, size = 0x4000, scoped, tag = 'input window, operand 3, single buffered']
    #allocation10 [shape = 's32[1]{0}', space=sflag, size = 0x4, scoped, tag = 'scoped memory for tpu_custom_call.1']
    #allocation11 [shape = 'u8[512]{0}', space=vmem, size = 0x400, scoped, tag = 'input window, operand 4, single buffered']
    #allocation12 [shape = 'u8[8192]{0}', space=vmem, size = 0x2000, scoped, tag = 'output window, operand 0']
    %10 = vsyncpa [#allocation4], 0
    %s11 = scalar_lea.sflag [#allocation4], 1
    %12 = vsyncpa %s11, 0
    %13 = vsyncpa [#allocation7], 0
    %14 = vsyncpa [#allocation10], 0
    %15 = vsyncpa [#allocation5], 0
    %s16 = scalar_lea.sflag [#allocation5], 1
    %17 = vsyncpa %s16, 0
    loop: start=0, step=1, limit=4
    $region2: #{tpu_custom_call.1} parent=1 // loop_pre_header
      _
    $region3: #{tpu_custom_call.1} parent=1 // loop_header
      %s19 = sphi 0, %s23
      %p20 = scmp.ge.s32.totalorder %s19, 4
      %s29 = sphi 0, %s31
      %s32 = sphi 0, %s29
      %s33 = sphi 0, %s32
      %s49 = sphi 0, %s33
      %s53 = sphi 0, %s53
      %s55 = sphi 0, %s53
      %s56 = sphi 0, %s55
      %s70 = sphi 0, %s56
      %s74 = sphi 0, %s74
      %s76 = sphi 0, %s74
      %s77 = sphi 0, %s76
      %s91 = sphi 0, %s77
      %s95 = sphi 0, %s95
      %s97 = sphi 0, %s95
      %s98 = sphi 0, %s97
      %s112 = sphi 0, %s98
      %s116 = sphi 0, %s116
      %s118 = sphi 0, %s116
      %s119 = sphi 0, %s118
      %s133 = sphi 0, %s119
      %s139 = sphi 0, %s141
      %s142 = sphi 0, %s139
      %s143 = sphi 0, %s142
      %s159 = sphi 0, %s143
    $region4: #{tpu_custom_call.1} parent=1 // loop_header_branch
      %22 = sbr.rel (%p20) target = $region8
    $region5: #{tpu_custom_call.1} parent=1 // loop_body
      %s24 = ssub.s32 %s19, 1
      %s25 = ssub.s32 %s19, 2
      %s26 = sadd.s32 %s19, 1
      %s27 = ssub.s32 %s19, %s26
      %p28 = scmp.eq.s32.totalorder %s27, 0
      %s30 = sadd.s32 %s29, 1
      %s31 = scalar_select %p28, %s29, %s30
      %p34 = pneg %p28
      %p35 = scmp.eq.s32.totalorder %s19, 1
      %p36 = por %p34, %p35
      %p37 = scmp.ne.s32.totalorder %s29, %s32
      %p38 = scmp.eq.s32.totalorder %s19, 0
      %p39 = por %p37, %p38
      %p40 = scmp.ne.s32.totalorder %s29, %s32
      %p41 = scmp.eq.s32.totalorder %s24, 1
      %p42 = por %p40, %p41
      %p43 = scmp.ne.s32.totalorder %s32, %s33
      %p44 = scmp.eq.s32.totalorder %s24, 0
      %p45 = por %p43, %p44
      %p46 = scmp.ne.s32.totalorder %s32, %s33
      %p47 = scmp.eq.s32.totalorder %s25, 1
      %p48 = por %p46, %p47
      %p50 = scmp.ne.s32.totalorder %s33, %s49
      %p51 = scmp.eq.s32.totalorder %s25, 0
      %p52 = por %p50, %p51
      %s54 = sadd.s32 %s53, 1
      %p57 = scmp.eq.s32.totalorder %s19, 1
      %p58 = scmp.ne.s32.totalorder %s53, %s55
      %p59 = scmp.eq.s32.totalorder %s19, 0
      %p60 = por %p58, %p59
      %p61 = scmp.ne.s32.totalorder %s53, %s55
      %p62 = scmp.eq.s32.totalorder %s24, 1
      %p63 = por %p61, %p62
      %p64 = scmp.ne.s32.totalorder %s55, %s56
      %p65 = scmp.eq.s32.totalorder %s24, 0
      %p66 = por %p64, %p65
      %p67 = scmp.ne.s32.totalorder %s55, %s56
      %p68 = scmp.eq.s32.totalorder %s25, 1
      %p69 = por %p67, %p68
      %p71 = scmp.ne.s32.totalorder %s56, %s70
      %p72 = scmp.eq.s32.totalorder %s25, 0
      %p73 = por %p71, %p72
      %s75 = sadd.s32 %s74, 1
      %p78 = scmp.eq.s32.totalorder %s19, 1
      %p79 = scmp.ne.s32.totalorder %s74, %s76
      %p80 = scmp.eq.s32.totalorder %s19, 0
      %p81 = por %p79, %p80
      %p82 = scmp.ne.s32.totalorder %s74, %s76
      %p83 = scmp.eq.s32.totalorder %s24, 1
      %p84 = por %p82, %p83
      %p85 = scmp.ne.s32.totalorder %s76, %s77
      %p86 = scmp.eq.s32.totalorder %s24, 0
      %p87 = por %p85, %p86
      %p88 = scmp.ne.s32.totalorder %s76, %s77
      %p89 = scmp.eq.s32.totalorder %s25, 1
      %p90 = por %p88, %p89
      %p92 = scmp.ne.s32.totalorder %s77, %s91
      %p93 = scmp.eq.s32.totalorder %s25, 0
      %p94 = por %p92, %p93
      %s96 = sadd.s32 %s95, 1
      %p99 = scmp.eq.s32.totalorder %s19, 1
      %p100 = scmp.ne.s32.totalorder %s95, %s97
      %p101 = scmp.eq.s32.totalorder %s19, 0
      %p102 = por %p100, %p101
      %p103 = scmp.ne.s32.totalorder %s95, %s97
      %p104 = scmp.eq.s32.totalorder %s24, 1
      %p105 = por %p103, %p104
      %p106 = scmp.ne.s32.totalorder %s97, %s98
      %p107 = scmp.eq.s32.totalorder %s24, 0
      %p108 = por %p106, %p107
      %p109 = scmp.ne.s32.totalorder %s97, %s98
      %p110 = scmp.eq.s32.totalorder %s25, 1
      %p111 = por %p109, %p110
      %p113 = scmp.ne.s32.totalorder %s98, %s112
      %p114 = scmp.eq.s32.totalorder %s25, 0
      %p115 = por %p113, %p114
      %s117 = sadd.s32 %s116, 1
      %p120 = scmp.eq.s32.totalorder %s19, 1
      %p121 = scmp.ne.s32.totalorder %s116, %s118
      %p122 = scmp.eq.s32.totalorder %s19, 0
      %p123 = por %p121, %p122
      %p124 = scmp.ne.s32.totalorder %s116, %s118
      %p125 = scmp.eq.s32.totalorder %s24, 1
      %p126 = por %p124, %p125
      %p127 = scmp.ne.s32.totalorder %s118, %s119
      %p128 = scmp.eq.s32.totalorder %s24, 0
      %p129 = por %p127, %p128
      %p130 = scmp.ne.s32.totalorder %s118, %s119
      %p131 = scmp.eq.s32.totalorder %s25, 1
      %p132 = por %p130, %p131
      %p134 = scmp.ne.s32.totalorder %s119, %s133
      %p135 = scmp.eq.s32.totalorder %s25, 0
      %p136 = por %p134, %p135
      %s137 = ssub.s32 %s19, %s26
      %p138 = scmp.eq.s32.totalorder %s137, 0
      %s140 = sadd.s32 %s139, 1
      %s141 = scalar_select %p138, %s139, %s140
      %p144 = pneg %p138
      %p145 = scmp.eq.s32.totalorder %s19, 1
      %p146 = por %p144, %p145
      %p147 = scmp.ne.s32.totalorder %s139, %s142
      %p148 = scmp.eq.s32.totalorder %s19, 0
      %p149 = por %p147, %p148
      %p150 = scmp.ne.s32.totalorder %s139, %s142
      %p151 = scmp.eq.s32.totalorder %s24, 1
      %p152 = por %p150, %p151
      %p153 = scmp.ne.s32.totalorder %s142, %s143
      %p154 = scmp.eq.s32.totalorder %s24, 0
      %p155 = por %p153, %p154
      %p156 = scmp.ne.s32.totalorder %s142, %s143
      %p157 = scmp.eq.s32.totalorder %s25, 1
      %p158 = por %p156, %p157
      %p160 = scmp.ne.s32.totalorder %s143, %s159
      %p161 = scmp.eq.s32.totalorder %s25, 0
      %p162 = por %p160, %p161
      %p163 = scmp.le.s32.totalorder 1, %s19
      %p164 = scmp.lt.s32.totalorder %s19, 3
      %p165 = pnand %p163, %p164
      %p166 = pneg %p165
      // Predicated region
      $region9: #{tpu_custom_call.1} parent=5 // pred_check
        _
      $region10: #{tpu_custom_call.1} parent=5 // pred_check_branch
        %168 = sbr.rel (%p165) target = $region12
      $region11: #{tpu_custom_call.1} parent=5 // pred_region
        %s169 = ssub.s32 %s19, 1
        // Predicated region
        $region13: #{tpu_custom_call.1} parent=11 // pred_check
          %p170 = pneg %p66
        $region14: #{tpu_custom_call.1} parent=11 // pred_check_branch
          %172 = sbr.rel (%p170) target = $region16
        $region15: #{tpu_custom_call.1} parent=11 // pred_region
          %s174 = ssub.s32 512, 512
          %175 = vsyncadd [#allocation7], %s174
          %s176 = sshll.u32 [#allocation6], 4
          %s177 = int_to_ptr.vmem [resolvable:$true] %s176
          %182 = dma.hbm_to_vmem [thread:$0]  %s1, 512, %s177, [#allocation7], 128, 128, 8
        $region16: #{tpu_custom_call.1} parent=11 // pred_fallthru
          _
        // Predicated region
        $region17: #{tpu_custom_call.1} parent=11 // pred_check
          %p183 = pneg %p87
        $region18: #{tpu_custom_call.1} parent=11 // pred_check_branch
          %185 = sbr.rel (%p183) target = $region20
        $region19: #{tpu_custom_call.1} parent=11 // pred_region
          %s187 = ssub.s32 16, 16
          %188 = vsyncadd [#allocation7], %s187
          %s190 = sshll.u32 [#allocation8], 4
          %s191 = int_to_ptr.vmem [resolvable:$true] %s190
          %193 = dma.hbm_to_vmem [thread:$0]  %s2, 16, %s191, [#allocation7]
        $region20: #{tpu_custom_call.1} parent=11 // pred_fallthru
          _
        // Predicated region
        $region21: #{tpu_custom_call.1} parent=11 // pred_check
          %p194 = pneg %p108
        $region22: #{tpu_custom_call.1} parent=11 // pred_check_branch
          %196 = sbr.rel (%p194) target = $region24
        $region23: #{tpu_custom_call.1} parent=11 // pred_region
          %s198 = ssub.s32 512, 512
          %199 = vsyncadd [#allocation10], %s198
          %s200 = sshll.u32 [#allocation9], 4
          %s201 = int_to_ptr.vmem [resolvable:$true] %s200
          %206 = dma.hbm_to_vmem [thread:$0]  %s3, 512, %s201, [#allocation10], 128, 128, 8
        $region24: #{tpu_custom_call.1} parent=11 // pred_fallthru
          _
        // Predicated region
        $region25: #{tpu_custom_call.1} parent=11 // pred_check
          %p207 = pneg %p129
        $region26: #{tpu_custom_call.1} parent=11 // pred_check_branch
          %209 = sbr.rel (%p207) target = $region28
        $region27: #{tpu_custom_call.1} parent=11 // pred_region
          %s211 = ssub.s32 16, 16
          %212 = vsyncadd [#allocation10], %s211
          %s214 = sshll.u32 [#allocation11], 4
          %s215 = int_to_ptr.vmem [resolvable:$true] %s214
          %217 = dma.hbm_to_vmem [thread:$0]  %s4, 16, %s215, [#allocation10]
        $region28: #{tpu_custom_call.1} parent=11 // pred_fallthru
          _
      $region12: #{tpu_custom_call.1} parent=5 // pred_fallthru
        _
      %p218 = scmp.lt.s32.totalorder %s19, 2
      // Predicated region
      $region29: #{tpu_custom_call.1} parent=5 // pred_check
        %p219 = pneg %p218
      $region30: #{tpu_custom_call.1} parent=5 // pred_check_branch
        %221 = sbr.rel (%p219) target = $region32
      $region31: #{tpu_custom_call.1} parent=5 // pred_region
        // Predicated region
        $region33: #{tpu_custom_call.1} parent=31 // pred_check
          %p222 = pneg %p39
        $region34: #{tpu_custom_call.1} parent=31 // pred_check_branch
          %224 = sbr.rel (%p222) target = $region36
        $region35: #{tpu_custom_call.1} parent=31 // pred_region
          %s225 = sand.u32 %s29, 1
          %s226 = scalar_lea.sflag [#allocation4], %s225
          %s227 = sand.u32 %s29, 1
          %s228 = smul.addr %s227, 8
          %s229 = scalar_lea.vmem [#allocation3], %s228
          %s231 = ssub.s32 128, 128
          %232 = vsyncadd %s226, %s231
          %s233 = smul.addr %s19, 128
          %s234 = scalar_lea.hbm %s0, %s233
          %s236 = sshll.u32 %s229, 4
          %s237 = int_to_ptr.vmem [resolvable:$true] %s236
          %239 = dma.hbm_to_vmem [thread:$0]  %s234, 128, %s237, %s226
        $region36: #{tpu_custom_call.1} parent=31 // pred_fallthru
          _
      $region32: #{tpu_custom_call.1} parent=5 // pred_fallthru
        _
      %p240 = scmp.le.s32.totalorder 1, %s19
      %p241 = scmp.lt.s32.totalorder %s19, 3
      %p242 = pnand %p240, %p241
      %p243 = pneg %p242
      // Predicated region
      $region37: #{tpu_custom_call.1} parent=5 // pred_check
        _
      $region38: #{tpu_custom_call.1} parent=5 // pred_check_branch
        %245 = sbr.rel (%p242) target = $region40
      $region39: #{tpu_custom_call.1} parent=5 // pred_region
        %s246 = ssub.s32 %s19, 1
        %s247 = sand.u32 %s32, 1
        %s248 = scalar_lea.sflag [#allocation4], %s247
        %s249 = sand.u32 %s32, 1
        %s250 = smul.addr %s249, 8
        %s251 = scalar_lea.vmem [#allocation3], %s250
        // Predicated region
        $region41: #{tpu_custom_call.1} parent=39 // pred_check
          %p252 = pneg %p45
        $region42: #{tpu_custom_call.1} parent=39 // pred_check_branch
          %254 = sbr.rel (%p252) target = $region44
        $region43: #{tpu_custom_call.1} parent=39 // pred_region
          %255 = dma.done %s248, 128
        $region44: #{tpu_custom_call.1} parent=39 // pred_fallthru
          _
        // Predicated region
        $region45: #{tpu_custom_call.1} parent=39 // pred_check
          %p256 = pneg %p66
        $region46: #{tpu_custom_call.1} parent=39 // pred_check_branch
          %258 = sbr.rel (%p256) target = $region48
        $region47: #{tpu_custom_call.1} parent=39 // pred_region
          %259 = dma.done [#allocation7], 512
        $region48: #{tpu_custom_call.1} parent=39 // pred_fallthru
          _
        // Predicated region
        $region49: #{tpu_custom_call.1} parent=39 // pred_check
          %p260 = pneg %p87
        $region50: #{tpu_custom_call.1} parent=39 // pred_check_branch
          %262 = sbr.rel (%p260) target = $region52
        $region51: #{tpu_custom_call.1} parent=39 // pred_region
          %263 = dma.done [#allocation7], 16
        $region52: #{tpu_custom_call.1} parent=39 // pred_fallthru
          _
        // Predicated region
        $region53: #{tpu_custom_call.1} parent=39 // pred_check
          %p264 = pneg %p108
        $region54: #{tpu_custom_call.1} parent=39 // pred_check_branch
          %266 = sbr.rel (%p264) target = $region56
        $region55: #{tpu_custom_call.1} parent=39 // pred_region
          %267 = dma.done [#allocation10], 512
        $region56: #{tpu_custom_call.1} parent=39 // pred_fallthru
          _
        // Predicated region
        $region57: #{tpu_custom_call.1} parent=39 // pred_check
          %p268 = pneg %p129
        $region58: #{tpu_custom_call.1} parent=39 // pred_check_branch
          %270 = sbr.rel (%p268) target = $region60
        $region59: #{tpu_custom_call.1} parent=39 // pred_region
          %271 = dma.done [#allocation10], 16
        $region60: #{tpu_custom_call.1} parent=39 // pred_fallthru
          _
        %s272 = sand.u32 %s32, 1
        %s273 = scalar_lea.sflag [#allocation4], %s272
        %s274 = sand.u32 %s32, 1
        %s275 = smul.addr %s274, 8
        %s276 = scalar_lea.vmem [#allocation3], %s275
        %p277 = pneg %p45
        %p278 = pneg %p42
        %p279 = pneg %p66
        %p280 = pneg %p63
        %p281 = pneg %p87
        %p282 = pneg %p84
        %p283 = pneg %p108
        %p284 = pneg %p105
        %p285 = pneg %p129
        %p286 = pneg %p126
        %p287 = pneg %p155
        %p288 = pneg %p152
        %s289 = sand.u32 %s142, 1
        %s290 = scalar_lea.sflag [#allocation5], %s289
        %s291 = sand.u32 %s142, 1
        %s292 = smul.addr %s291, 8
        %s293 = scalar_lea.vmem [#allocation12], %s292
        %v294 = vld [vmem:[#allocation6] sm:$0xff]
        %v295 = vld [vmem:[#allocation6 + $0x8] sm:$0xff]
        %v296 = vld [vmem:[#allocation6 + $0x10] sm:$0xff]
        %v297 = vld [vmem:[#allocation6 + $0x18] sm:$0xff]
        %v298 = vld [vmem:[%s251] sm:$0xff]
        %v299 = vld [vmem:[#allocation8] sm:$0x1]
        %v301 = vlaneseq
        %v302 = vshrl.u32 %v301, 7
        %v303 = vsub.s32 0, %v302
        %v304 = vrot.slane %v299, %v303
        %vm306 = vcmask 261120
        %v308 = vsel %vm306, %v298, 0
        %310 = vmatprep.subr.mxu0 0.0
        %311 = vmatpush1.msra.mxu0 %v294
        %312 = vmatprep.subr.mxu0 0.0
        %313 = vmatpush1.msra.mxu0 %v295
        %314 = vmatprep.subr.mxu0 0.0
        %315 = vmatpush1.msra.mxu0 %v296
        %316 = vmatprep.subr.mxu0 0.0
        %317 = vmatpush1.msra.mxu0 %v297
        %318 = vmatprep.subr.mxu0 0.0
        %319 = vmatpush1.msra.mxu0 0.0
        %320 = vmatprep.subr.mxu0 0.0
        %321 = vmatpush1.msra.mxu0 0.0
        %322 = vmatprep.subr.mxu0 0.0
        %323 = vmatpush1.msra.mxu0 0.0
        %324 = vmatprep.subr.mxu0 0.0
        %325 = vmatpush1.msra.mxu0 0.0
        %326 = vmatprep.subr.mxu0 0.0
        %327 = vmatpush1.msra.mxu0 0.0
        %328 = vmatprep.subr.mxu0 0.0
        %329 = vmatpush1.msra.mxu0 0.0
        %330 = vmatprep.subr.mxu0 0.0
        %331 = vmatpush1.msra.mxu0 0.0
        %332 = vmatprep.subr.mxu0 0.0
        %333 = vmatpush1.msra.mxu0 0.0
        %334 = vmatprep.subr.mxu0 0.0
        %335 = vmatpush1.msra.mxu0 0.0
        %336 = vmatprep.subr.mxu0 0.0
        %337 = vmatpush1.msra.mxu0 0.0
        %338 = vmatprep.subr.mxu0 0.0
        %339 = vmatpush1.msra.mxu0 0.0
        %340 = vmatprep.subr.mxu0 0.0
        %341 = vmatpush1.msra.mxu0 0.0
        %342 = vmatprep.subr.mxu0 0.0
        %343 = vmatpush1.msra.mxu0 0.0
        %344 = vmatprep.subr.mxu0 0.0
        %345 = vmatpush1.msra.mxu0 0.0
        %346 = vmatprep.subr.mxu0 0.0
        %347 = vmatpush1.msra.mxu0 0.0
        %348 = vmatprep.subr.mxu0 0.0
        %349 = vmatpush1.msra.mxu0 0.0
        %350 = vmatprep.subr.mxu0 0.0
        %351 = vmatpush1.msra.mxu0 0.0
        %352 = vmatprep.subr.mxu0 0.0
        %353 = vmatpush1.msra.mxu0 0.0
        %354 = vmatprep.subr.mxu0 0.0
        %355 = vmatpush1.msra.mxu0 0.0
        %356 = vmatprep.subr.mxu0 0.0
        %357 = vmatpush1.msra.mxu0 0.0
        %358 = vmatprep.subr.mxu0 0.0
        %359 = vmatpush1.msra.mxu0 0.0
        %360 = vmatprep.subr.mxu0 0.0
        %361 = vmatpush1.msra.mxu0 0.0
        %362 = vmatprep.subr.mxu0 0.0
        %363 = vmatpush1.msra.mxu0 0.0
        %364 = vmatprep.subr.mxu0 0.0
        %365 = vmatpush1.msra.mxu0 0.0
        %366 = vmatprep.subr.mxu0 0.0
        %367 = vmatpush1.msra.mxu0 0.0
        %368 = vmatprep.subr.mxu0 0.0
        %369 = vmatpush1.msra.mxu0 0.0
        %370 = vmatprep.subr.mxu0 0.0
        %371 = vmatpush1.msra.mxu0 0.0
        %372 = vmatprep.subr.mxu0 0.0
        %373 = vmatpush1.msra.mxu0 0.0
        %374 = vmatprep.mubr.f32.mxu0 0.0
        %375 = vmatmul.mubr.f32.gmra.mrb[0].mxu0 %v308
        %v376 = vpop.f32.mrb[0].mxu0
        %v377 = vadd.f32 %v304, %v376
        %v378 = vpop.f32.mrb[0].mxu0
        %379 = vdwg.mxu0
        %381 = vrot.lane.b32.xlu0 %v377, 120
        %v382 = vpop.permute.xlu0 %381
        %383 = vrot.lane.b32.xlu0 %v377, 112
        %v384 = vpop.permute.xlu0 %383
        %385 = vrot.lane.b32.xlu0 %v377, 104
        %v386 = vpop.permute.xlu0 %385
        %387 = vrot.lane.b32.xlu0 %v377, 96
        %v388 = vpop.permute.xlu0 %387
        %vm389 = vcmask 64512
        %v390 = vsel %vm389, %v377, 0
        %v392 = vsel %vm389, %v388, 0
        %394 = vmatprep.subr.mxu0 0.0
        %395 = vmatpush1.xpose.msra.mxu0 %v392
        %396 = vmatprep.subr.mxu0 0.0
        %397 = vmatpush1.xpose.msra.mxu0 0.0
        %398 = vmatprep.subr.mxu0 0.0
        %399 = vmatpush1.xpose.msra.mxu0 0.0
        %400 = vmatprep.subr.mxu0 0.0
        %401 = vmatpush1.xpose.msra.mxu0 0.0
        %402 = vmatprep.subr.mxu0 0.0
        %403 = vmatpush1.xpose.msra.mxu0 0.0
        %404 = vmatprep.subr.mxu0 0.0
        %405 = vmatpush1.xpose.msra.mxu0 0.0
        %406 = vmatprep.subr.mxu0 0.0
        %407 = vmatpush1.xpose.msra.mxu0 0.0
        %408 = vmatprep.subr.mxu0 0.0
        %409 = vmatpush1.xpose.msra.mxu0 0.0
        %410 = vmatprep.subr.mxu0 0.0
        %411 = vmatpush1.xpose.msra.mxu0 0.0
        %412 = vmatprep.subr.mxu0 0.0
        %413 = vmatpush1.xpose.msra.mxu0 0.0
        %414 = vmatprep.subr.mxu0 0.0
        %415 = vmatpush1.xpose.msra.mxu0 0.0
        %416 = vmatprep.subr.mxu0 0.0
        %417 = vmatpush1.xpose.msra.mxu0 0.0
        %418 = vmatprep.subr.mxu0 0.0
        %419 = vmatpush1.xpose.msra.mxu0 0.0
        %420 = vmatprep.subr.mxu0 0.0
        %421 = vmatpush1.xpose.msra.mxu0 0.0
        %422 = vmatprep.subr.mxu0 0.0
        %423 = vmatpush1.xpose.msra.mxu0 0.0
        %424 = vmatprep.subr.mxu0 0.0
        %425 = vmatpush1.xpose.msra.mxu0 0.0
        %426 = vmatprep.subr.mxu0 0.0
        %427 = vmatpush1.xpose.msra.mxu0 0.0
        %428 = vmatprep.subr.mxu0 0.0
        %429 = vmatpush1.xpose.msra.mxu0 0.0
        %430 = vmatprep.subr.mxu0 0.0
        %431 = vmatpush1.xpose.msra.mxu0 0.0
        %432 = vmatprep.subr.mxu0 0.0
        %433 = vmatpush1.xpose.msra.mxu0 0.0
        %434 = vmatprep.subr.mxu0 0.0
        %435 = vmatpush1.xpose.msra.mxu0 0.0
        %436 = vmatprep.subr.mxu0 0.0
        %437 = vmatpush1.xpose.msra.mxu0 0.0
        %438 = vmatprep.subr.mxu0 0.0
        %439 = vmatpush1.xpose.msra.mxu0 0.0
        %440 = vmatprep.subr.mxu0 0.0
        %441 = vmatpush1.xpose.msra.mxu0 0.0
        %442 = vmatprep.subr.mxu0 0.0
        %443 = vmatpush1.xpose.msra.mxu0 0.0
        %444 = vmatprep.subr.mxu0 0.0
        %445 = vmatpush1.xpose.msra.mxu0 0.0
        %446 = vmatprep.subr.mxu0 0.0
        %447 = vmatpush1.xpose.msra.mxu0 0.0
        %448 = vmatprep.subr.mxu0 0.0
        %449 = vmatpush1.xpose.msra.mxu0 0.0
        %450 = vmatprep.subr.mxu0 0.0
        %451 = vmatpush1.xpose.msra.mxu0 0.0
        %452 = vmatprep.subr.mxu0 0.0
        %453 = vmatpush1.xpose.msra.mxu0 0.0
        %454 = vmatprep.subr.mxu0 0.0
        %455 = vmatpush1.xpose.msra.mxu0 0.0
        %456 = vmatprep.subr.mxu0 0.0
        %457 = vmatpush1.xpose.msra.mxu0 0.0
        %458 = vmatprep.mubr.f32.mxu0 0.0
        %459 = vmatmul.mubr.f32.gmra.mrb[0].mxu0 %v390
        %v460 = vpop.f32.mrb[0].mxu0
        %v461 = vadd.f32 0.0, %v460
        %v462 = vpop.f32.mrb[0].mxu0
        %463 = vdwg.mxu0
        %464 = vrot.lane.b32.xlu0 %v382, 96
        %v465 = vpop.permute.xlu0 %464
        %v466 = vsel %vm389, %v382, 0
        %v468 = vsel %vm389, %v465, 0
        %470 = vmatprep.subr.mxu0 0.0
        %471 = vmatpush1.xpose.msra.mxu0 %v468
        %472 = vmatprep.subr.mxu0 0.0
        %473 = vmatpush1.xpose.msra.mxu0 0.0
        %474 = vmatprep.subr.mxu0 0.0
        %475 = vmatpush1.xpose.msra.mxu0 0.0
        %476 = vmatprep.subr.mxu0 0.0
        %477 = vmatpush1.xpose.msra.mxu0 0.0
        %478 = vmatprep.subr.mxu0 0.0
        %479 = vmatpush1.xpose.msra.mxu0 0.0
        %480 = vmatprep.subr.mxu0 0.0
        %481 = vmatpush1.xpose.msra.mxu0 0.0
        %482 = vmatprep.subr.mxu0 0.0
        %483 = vmatpush1.xpose.msra.mxu0 0.0
        %484 = vmatprep.subr.mxu0 0.0
        %485 = vmatpush1.xpose.msra.mxu0 0.0
        %486 = vmatprep.subr.mxu0 0.0
        %487 = vmatpush1.xpose.msra.mxu0 0.0
        %488 = vmatprep.subr.mxu0 0.0
        %489 = vmatpush1.xpose.msra.mxu0 0.0
        %490 = vmatprep.subr.mxu0 0.0
        %491 = vmatpush1.xpose.msra.mxu0 0.0
        %492 = vmatprep.subr.mxu0 0.0
        %493 = vmatpush1.xpose.msra.mxu0 0.0
        %494 = vmatprep.subr.mxu0 0.0
        %495 = vmatpush1.xpose.msra.mxu0 0.0
        %496 = vmatprep.subr.mxu0 0.0
        %497 = vmatpush1.xpose.msra.mxu0 0.0
        %498 = vmatprep.subr.mxu0 0.0
        %499 = vmatpush1.xpose.msra.mxu0 0.0
        %500 = vmatprep.subr.mxu0 0.0
        %501 = vmatpush1.xpose.msra.mxu0 0.0
        %502 = vmatprep.subr.mxu0 0.0
        %503 = vmatpush1.xpose.msra.mxu0 0.0
        %504 = vmatprep.subr.mxu0 0.0
        %505 = vmatpush1.xpose.msra.mxu0 0.0
        %506 = vmatprep.subr.mxu0 0.0
        %507 = vmatpush1.xpose.msra.mxu0 0.0
        %508 = vmatprep.subr.mxu0 0.0
        %509 = vmatpush1.xpose.msra.mxu0 0.0
        %510 = vmatprep.subr.mxu0 0.0
        %511 = vmatpush1.xpose.msra.mxu0 0.0
        %512 = vmatprep.subr.mxu0 0.0
        %513 = vmatpush1.xpose.msra.mxu0 0.0
        %514 = vmatprep.subr.mxu0 0.0
        %515 = vmatpush1.xpose.msra.mxu0 0.0
        %516 = vmatprep.subr.mxu0 0.0
        %517 = vmatpush1.xpose.msra.mxu0 0.0
        %518 = vmatprep.subr.mxu0 0.0
        %519 = vmatpush1.xpose.msra.mxu0 0.0
        %520 = vmatprep.subr.mxu0 0.0
        %521 = vmatpush1.xpose.msra.mxu0 0.0
        %522 = vmatprep.subr.mxu0 0.0
        %523 = vmatpush1.xpose.msra.mxu0 0.0
        %524 = vmatprep.subr.mxu0 0.0
        %525 = vmatpush1.xpose.msra.mxu0 0.0
        %526 = vmatprep.subr.mxu0 0.0
        %527 = vmatpush1.xpose.msra.mxu0 0.0
        %528 = vmatprep.subr.mxu0 0.0
        %529 = vmatpush1.xpose.msra.mxu0 0.0
        %530 = vmatprep.subr.mxu0 0.0
        %531 = vmatpush1.xpose.msra.mxu0 0.0
        %532 = vmatprep.subr.mxu0 0.0
        %533 = vmatpush1.xpose.msra.mxu0 0.0
        %534 = vmatprep.mubr.f32.mxu0 0.0
        %535 = vmatmul.mubr.f32.gmra.mrb[0].mxu0 %v466
        %v536 = vpop.f32.mrb[0].mxu0
        %v537 = vadd.f32 0.0, %v536
        %v538 = vpop.f32.mrb[0].mxu0
        %539 = vdwg.mxu0
        %540 = vrot.lane.b32.xlu0 %v384, 96
        %v541 = vpop.permute.xlu0 %540
        %v542 = vsel %vm389, %v384, 0
        %v544 = vsel %vm389, %v541, 0
        %546 = vmatprep.subr.mxu0 0.0
        %547 = vmatpush1.xpose.msra.mxu0 %v544
        %548 = vmatprep.subr.mxu0 0.0
        %549 = vmatpush1.xpose.msra.mxu0 0.0
        %550 = vmatprep.subr.mxu0 0.0
        %551 = vmatpush1.xpose.msra.mxu0 0.0
        %552 = vmatprep.subr.mxu0 0.0
        %553 = vmatpush1.xpose.msra.mxu0 0.0
        %554 = vmatprep.subr.mxu0 0.0
        %555 = vmatpush1.xpose.msra.mxu0 0.0
        %556 = vmatprep.subr.mxu0 0.0
        %557 = vmatpush1.xpose.msra.mxu0 0.0
        %558 = vmatprep.subr.mxu0 0.0
        %559 = vmatpush1.xpose.msra.mxu0 0.0
        %560 = vmatprep.subr.mxu0 0.0
        %561 = vmatpush1.xpose.msra.mxu0 0.0
        %562 = vmatprep.subr.mxu0 0.0
        %563 = vmatpush1.xpose.msra.mxu0 0.0
        %564 = vmatprep.subr.mxu0 0.0
        %565 = vmatpush1.xpose.msra.mxu0 0.0
        %566 = vmatprep.subr.mxu0 0.0
        %567 = vmatpush1.xpose.msra.mxu0 0.0
        %568 = vmatprep.subr.mxu0 0.0
        %569 = vmatpush1.xpose.msra.mxu0 0.0
        %570 = vmatprep.subr.mxu0 0.0
        %571 = vmatpush1.xpose.msra.mxu0 0.0
        %572 = vmatprep.subr.mxu0 0.0
        %573 = vmatpush1.xpose.msra.mxu0 0.0
        %574 = vmatprep.subr.mxu0 0.0
        %575 = vmatpush1.xpose.msra.mxu0 0.0
        %576 = vmatprep.subr.mxu0 0.0
        %577 = vmatpush1.xpose.msra.mxu0 0.0
        %578 = vmatprep.subr.mxu0 0.0
        %579 = vmatpush1.xpose.msra.mxu0 0.0
        %580 = vmatprep.subr.mxu0 0.0
        %581 = vmatpush1.xpose.msra.mxu0 0.0
        %582 = vmatprep.subr.mxu0 0.0
        %583 = vmatpush1.xpose.msra.mxu0 0.0
        %584 = vmatprep.subr.mxu0 0.0
        %585 = vmatpush1.xpose.msra.mxu0 0.0
        %586 = vmatprep.subr.mxu0 0.0
        %587 = vmatpush1.xpose.msra.mxu0 0.0
        %588 = vmatprep.subr.mxu0 0.0
        %589 = vmatpush1.xpose.msra.mxu0 0.0
        %590 = vmatprep.subr.mxu0 0.0
        %591 = vmatpush1.xpose.msra.mxu0 0.0
        %592 = vmatprep.subr.mxu0 0.0
        %593 = vmatpush1.xpose.msra.mxu0 0.0
        %594 = vmatprep.subr.mxu0 0.0
        %595 = vmatpush1.xpose.msra.mxu0 0.0
        %596 = vmatprep.subr.mxu0 0.0
        %597 = vmatpush1.xpose.msra.mxu0 0.0
        %598 = vmatprep.subr.mxu0 0.0
        %599 = vmatpush1.xpose.msra.mxu0 0.0
        %600 = vmatprep.subr.mxu0 0.0
        %601 = vmatpush1.xpose.msra.mxu0 0.0
        %602 = vmatprep.subr.mxu0 0.0
        %603 = vmatpush1.xpose.msra.mxu0 0.0
        %604 = vmatprep.subr.mxu0 0.0
        %605 = vmatpush1.xpose.msra.mxu0 0.0
        %606 = vmatprep.subr.mxu0 0.0
        %607 = vmatpush1.xpose.msra.mxu0 0.0
        %608 = vmatprep.subr.mxu0 0.0
        %609 = vmatpush1.xpose.msra.mxu0 0.0
        %610 = vmatprep.mubr.f32.mxu0 0.0
        %611 = vmatmul.mubr.f32.gmra.mrb[0].mxu0 %v542
        %v612 = vpop.f32.mrb[0].mxu0
        %v613 = vadd.f32 0.0, %v612
        %v614 = vpop.f32.mrb[0].mxu0
        %615 = vdwg.mxu0
        %616 = vrot.lane.b32.xlu0 %v386, 96
        %v617 = vpop.permute.xlu0 %616
        %v618 = vsel %vm389, %v386, 0
        %v620 = vsel %vm389, %v617, 0
        %622 = vmatprep.subr.mxu0 0.0
        %623 = vmatpush1.xpose.msra.mxu0 %v620
        %624 = vmatprep.subr.mxu0 0.0
        %625 = vmatpush1.xpose.msra.mxu0 0.0
        %626 = vmatprep.subr.mxu0 0.0
        %627 = vmatpush1.xpose.msra.mxu0 0.0
        %628 = vmatprep.subr.mxu0 0.0
        %629 = vmatpush1.xpose.msra.mxu0 0.0
        %630 = vmatprep.subr.mxu0 0.0
        %631 = vmatpush1.xpose.msra.mxu0 0.0
        %632 = vmatprep.subr.mxu0 0.0
        %633 = vmatpush1.xpose.msra.mxu0 0.0
        %634 = vmatprep.subr.mxu0 0.0
        %635 = vmatpush1.xpose.msra.mxu0 0.0
        %636 = vmatprep.subr.mxu0 0.0
        %637 = vmatpush1.xpose.msra.mxu0 0.0
        %638 = vmatprep.subr.mxu0 0.0
        %639 = vmatpush1.xpose.msra.mxu0 0.0
        %640 = vmatprep.subr.mxu0 0.0
        %641 = vmatpush1.xpose.msra.mxu0 0.0
        %642 = vmatprep.subr.mxu0 0.0
        %643 = vmatpush1.xpose.msra.mxu0 0.0
        %644 = vmatprep.subr.mxu0 0.0
        %645 = vmatpush1.xpose.msra.mxu0 0.0
        %646 = vmatprep.subr.mxu0 0.0
        %647 = vmatpush1.xpose.msra.mxu0 0.0
        %648 = vmatprep.subr.mxu0 0.0
        %649 = vmatpush1.xpose.msra.mxu0 0.0
        %650 = vmatprep.subr.mxu0 0.0
        %651 = vmatpush1.xpose.msra.mxu0 0.0
        %652 = vmatprep.subr.mxu0 0.0
        %653 = vmatpush1.xpose.msra.mxu0 0.0
        %654 = vmatprep.subr.mxu0 0.0
        %655 = vmatpush1.xpose.msra.mxu0 0.0
        %656 = vmatprep.subr.mxu0 0.0
        %657 = vmatpush1.xpose.msra.mxu0 0.0
        %658 = vmatprep.subr.mxu0 0.0
        %659 = vmatpush1.xpose.msra.mxu0 0.0
        %660 = vmatprep.subr.mxu0 0.0
        %661 = vmatpush1.xpose.msra.mxu0 0.0
        %662 = vmatprep.subr.mxu0 0.0
        %663 = vmatpush1.xpose.msra.mxu0 0.0
        %664 = vmatprep.subr.mxu0 0.0
        %665 = vmatpush1.xpose.msra.mxu0 0.0
        %666 = vmatprep.subr.mxu0 0.0
        %667 = vmatpush1.xpose.msra.mxu0 0.0
        %668 = vmatprep.subr.mxu0 0.0
        %669 = vmatpush1.xpose.msra.mxu0 0.0
        %670 = vmatprep.subr.mxu0 0.0
        %671 = vmatpush1.xpose.msra.mxu0 0.0
        %672 = vmatprep.subr.mxu0 0.0
        %673 = vmatpush1.xpose.msra.mxu0 0.0
        %674 = vmatprep.subr.mxu0 0.0
        %675 = vmatpush1.xpose.msra.mxu0 0.0
        %676 = vmatprep.subr.mxu0 0.0
        %677 = vmatpush1.xpose.msra.mxu0 0.0
        %678 = vmatprep.subr.mxu0 0.0
        %679 = vmatpush1.xpose.msra.mxu0 0.0
        %680 = vmatprep.subr.mxu0 0.0
        %681 = vmatpush1.xpose.msra.mxu0 0.0
        %682 = vmatprep.subr.mxu0 0.0
        %683 = vmatpush1.xpose.msra.mxu0 0.0
        %684 = vmatprep.subr.mxu0 0.0
        %685 = vmatpush1.xpose.msra.mxu0 0.0
        %686 = vmatprep.mubr.f32.mxu0 0.0
        %687 = vmatmul.mubr.f32.gmra.mrb[0].mxu0 %v618
        %v688 = vpop.f32.mrb[0].mxu0
        %v689 = vadd.f32 0.0, %v688
        %v690 = vpop.f32.mrb[0].mxu0
        %691 = vdwg.mxu0
        %v692 = vlaneseq
        %v693 = vshrl.u32 %v692, 7
        %v694 = vlaneseq
        %v695 = vand.u32 %v694, 127
        %vm696 = vcmp.le.s32.totalorder %v695, %v693
        %v697 = vsel %vm696, 1, 0
        %vm698 = vcmp.eq.s32.totalorder %v697, 1
        %v699 = vsel %vm698, %v461, -1e+30
        %v700 = vsel %vm698, %v537, -1e+30
        %v701 = vsel %vm698, %v613, -1e+30
        %v702 = vsel %vm698, %v689, -1e+30
        %v703 = vsel %vm389, %v699, -inf
        %704 = vmax.xlane.f32.xlu0 %v703
        %v705 = vpop.xlane.xlu0 %704
        %v706 = vsel %vm389, %v700, -inf
        %707 = vmax.xlane.f32.xlu0 %v706
        %v708 = vpop.xlane.xlu0 %707
        %v709 = vsel %vm389, %v701, -inf
        %710 = vmax.xlane.f32.xlu0 %v709
        %v711 = vpop.xlane.xlu0 %710
        %v712 = vsel %vm389, %v702, -inf
        %713 = vmax.xlane.f32.xlu0 %v712
        %v714 = vpop.xlane.xlu0 %713
        %v715 = vsub.f32 %v699, %v705
        %v716 = vsub.f32 %v700, %v708
        %v717 = vsub.f32 %v701, %v711
        %v718 = vsub.f32 %v702, %v714
        %v719 = vmul.f32 %v715, 1.442695
        %v720 = vpow.pop %v719
        %v721 = vmul.f32 %v716, 1.442695
        %v722 = vpow.pop %v721
        %v723 = vmul.f32 %v717, 1.442695
        %v724 = vpow.pop %v723
        %v725 = vmul.f32 %v718, 1.442695
        %v726 = vpow.pop %v725
        %v727 = vsel %vm389, %v720, 0.0
        %728 = vadd.xlane.f32.xlu0 %v727
        %v729 = vpop.xlane.xlu0 %728
        %v730 = vsel %vm389, %v722, 0.0
        %731 = vadd.xlane.f32.xlu0 %v730
        %v732 = vpop.xlane.xlu0 %731
        %v733 = vsel %vm389, %v724, 0.0
        %734 = vadd.xlane.f32.xlu0 %v733
        %v735 = vpop.xlane.xlu0 %734
        %v736 = vsel %vm389, %v726, 0.0
        %737 = vadd.xlane.f32.xlu0 %v736
        %v738 = vpop.xlane.xlu0 %737
        %v739 = vrcp.pop %v729
        %v740 = vrcp.pop %v732
        %v741 = vrcp.pop %v735
        %v742 = vrcp.pop %v738
        %v743 = vmul.f32 %v720, %v739
        %v744 = vmul.f32 %v722, %v740
        %v745 = vmul.f32 %v724, %v741
        %v746 = vmul.f32 %v726, %v742
        %747 = vrot.lane.b32.xlu0 %v377, 64
        %v748 = vpop.permute.xlu0 %747
        %v751 = vsel %vm389, %v743, 0
        %753 = vmatprep.subr.mxu0 0.0
        %754 = vmatpush1.msra.mxu0 %v748
        %755 = vmatprep.subr.mxu0 0.0
        %756 = vmatpush1.msra.mxu0 0.0
        %757 = vmatprep.subr.mxu0 0.0
        %758 = vmatpush1.msra.mxu0 0.0
        %759 = vmatprep.subr.mxu0 0.0
        %760 = vmatpush1.msra.mxu0 0.0
        %761 = vmatprep.subr.mxu0 0.0
        %762 = vmatpush1.msra.mxu0 0.0
        %763 = vmatprep.subr.mxu0 0.0
        %764 = vmatpush1.msra.mxu0 0.0
        %765 = vmatprep.subr.mxu0 0.0
        %766 = vmatpush1.msra.mxu0 0.0
        %767 = vmatprep.subr.mxu0 0.0
        %768 = vmatpush1.msra.mxu0 0.0
        %769 = vmatprep.subr.mxu0 0.0
        %770 = vmatpush1.msra.mxu0 0.0
        %771 = vmatprep.subr.mxu0 0.0
        %772 = vmatpush1.msra.mxu0 0.0
        %773 = vmatprep.subr.mxu0 0.0
        %774 = vmatpush1.msra.mxu0 0.0
        %775 = vmatprep.subr.mxu0 0.0
        %776 = vmatpush1.msra.mxu0 0.0
        %777 = vmatprep.subr.mxu0 0.0
        %778 = vmatpush1.msra.mxu0 0.0
        %779 = vmatprep.subr.mxu0 0.0
        %780 = vmatpush1.msra.mxu0 0.0
        %781 = vmatprep.subr.mxu0 0.0
        %782 = vmatpush1.msra.mxu0 0.0
        %783 = vmatprep.subr.mxu0 0.0
        %784 = vmatpush1.msra.mxu0 0.0
        %785 = vmatprep.subr.mxu0 0.0
        %786 = vmatpush1.msra.mxu0 0.0
        %787 = vmatprep.subr.mxu0 0.0
        %788 = vmatpush1.msra.mxu0 0.0
        %789 = vmatprep.subr.mxu0 0.0
        %790 = vmatpush1.msra.mxu0 0.0
        %791 = vmatprep.subr.mxu0 0.0
        %792 = vmatpush1.msra.mxu0 0.0
        %793 = vmatprep.subr.mxu0 0.0
        %794 = vmatpush1.msra.mxu0 0.0
        %795 = vmatprep.subr.mxu0 0.0
        %796 = vmatpush1.msra.mxu0 0.0
        %797 = vmatprep.subr.mxu0 0.0
        %798 = vmatpush1.msra.mxu0 0.0
        %799 = vmatprep.subr.mxu0 0.0
        %800 = vmatpush1.msra.mxu0 0.0
        %801 = vmatprep.subr.mxu0 0.0
        %802 = vmatpush1.msra.mxu0 0.0
        %803 = vmatprep.subr.mxu0 0.0
        %804 = vmatpush1.msra.mxu0 0.0
        %805 = vmatprep.subr.mxu0 0.0
        %806 = vmatpush1.msra.mxu0 0.0
        %807 = vmatprep.subr.mxu0 0.0
        %808 = vmatpush1.msra.mxu0 0.0
        %809 = vmatprep.subr.mxu0 0.0
        %810 = vmatpush1.msra.mxu0 0.0
        %811 = vmatprep.subr.mxu0 0.0
        %812 = vmatpush1.msra.mxu0 0.0
        %813 = vmatprep.subr.mxu0 0.0
        %814 = vmatpush1.msra.mxu0 0.0
        %815 = vmatprep.subr.mxu0 0.0
        %816 = vmatpush1.msra.mxu0 0.0
        %817 = vmatprep.mubr.f32.mxu0 0.0
        %818 = vmatmul.mubr.f32.gmra.mrb[0].mxu0 %v751
        %v819 = vpop.f32.mrb[0].mxu0
        %v820 = vadd.f32 0.0, %v819
        %v821 = vpop.f32.mrb[0].mxu0
        %822 = vdwg.mxu0
        %823 = vrot.lane.b32.xlu0 %v382, 64
        %v824 = vpop.permute.xlu0 %823
        %v827 = vsel %vm389, %v744, 0
        %829 = vmatprep.subr.mxu0 0.0
        %830 = vmatpush1.msra.mxu0 %v824
        %831 = vmatprep.subr.mxu0 0.0
        %832 = vmatpush1.msra.mxu0 0.0
        %833 = vmatprep.subr.mxu0 0.0
        %834 = vmatpush1.msra.mxu0 0.0
        %835 = vmatprep.subr.mxu0 0.0
        %836 = vmatpush1.msra.mxu0 0.0
        %837 = vmatprep.subr.mxu0 0.0
        %838 = vmatpush1.msra.mxu0 0.0
        %839 = vmatprep.subr.mxu0 0.0
        %840 = vmatpush1.msra.mxu0 0.0
        %841 = vmatprep.subr.mxu0 0.0
        %842 = vmatpush1.msra.mxu0 0.0
        %843 = vmatprep.subr.mxu0 0.0
        %844 = vmatpush1.msra.mxu0 0.0
        %845 = vmatprep.subr.mxu0 0.0
        %846 = vmatpush1.msra.mxu0 0.0
        %847 = vmatprep.subr.mxu0 0.0
        %848 = vmatpush1.msra.mxu0 0.0
        %849 = vmatprep.subr.mxu0 0.0
        %850 = vmatpush1.msra.mxu0 0.0
        %851 = vmatprep.subr.mxu0 0.0
        %852 = vmatpush1.msra.mxu0 0.0
        %853 = vmatprep.subr.mxu0 0.0
        %854 = vmatpush1.msra.mxu0 0.0
        %855 = vmatprep.subr.mxu0 0.0
        %856 = vmatpush1.msra.mxu0 0.0
        %857 = vmatprep.subr.mxu0 0.0
        %858 = vmatpush1.msra.mxu0 0.0
        %859 = vmatprep.subr.mxu0 0.0
        %860 = vmatpush1.msra.mxu0 0.0
        %861 = vmatprep.subr.mxu0 0.0
        %862 = vmatpush1.msra.mxu0 0.0
        %863 = vmatprep.subr.mxu0 0.0
        %864 = vmatpush1.msra.mxu0 0.0
        %865 = vmatprep.subr.mxu0 0.0
        %866 = vmatpush1.msra.mxu0 0.0
        %867 = vmatprep.subr.mxu0 0.0
        %868 = vmatpush1.msra.mxu0 0.0
        %869 = vmatprep.subr.mxu0 0.0
        %870 = vmatpush1.msra.mxu0 0.0
        %871 = vmatprep.subr.mxu0 0.0
        %872 = vmatpush1.msra.mxu0 0.0
        %873 = vmatprep.subr.mxu0 0.0
        %874 = vmatpush1.msra.mxu0 0.0
        %875 = vmatprep.subr.mxu0 0.0
        %876 = vmatpush1.msra.mxu0 0.0
        %877 = vmatprep.subr.mxu0 0.0
        %878 = vmatpush1.msra.mxu0 0.0
        %879 = vmatprep.subr.mxu0 0.0
        %880 = vmatpush1.msra.mxu0 0.0
        %881 = vmatprep.subr.mxu0 0.0
        %882 = vmatpush1.msra.mxu0 0.0
        %883 = vmatprep.subr.mxu0 0.0
        %884 = vmatpush1.msra.mxu0 0.0
        %885 = vmatprep.subr.mxu0 0.0
        %886 = vmatpush1.msra.mxu0 0.0
        %887 = vmatprep.subr.mxu0 0.0
        %888 = vmatpush1.msra.mxu0 0.0
        %889 = vmatprep.subr.mxu0 0.0
        %890 = vmatpush1.msra.mxu0 0.0
        %891 = vmatprep.subr.mxu0 0.0
        %892 = vmatpush1.msra.mxu0 0.0
        %893 = vmatprep.mubr.f32.mxu0 0.0
        %894 = vmatmul.mubr.f32.gmra.mrb[0].mxu0 %v827
        %v895 = vpop.f32.mrb[0].mxu0
        %v896 = vadd.f32 0.0, %v895
        %v897 = vpop.f32.mrb[0].mxu0
        %898 = vdwg.mxu0
        %899 = vrot.lane.b32.xlu0 %v384, 64
        %v900 = vpop.permute.xlu0 %899
        %v903 = vsel %vm389, %v745, 0
        %905 = vmatprep.subr.mxu0 0.0
        %906 = vmatpush1.msra.mxu0 %v900
        %907 = vmatprep.subr.mxu0 0.0
        %908 = vmatpush1.msra.mxu0 0.0
        %909 = vmatprep.subr.mxu0 0.0
        %910 = vmatpush1.msra.mxu0 0.0
        %911 = vmatprep.subr.mxu0 0.0
        %912 = vmatpush1.msra.mxu0 0.0
        %913 = vmatprep.subr.mxu0 0.0
        %914 = vmatpush1.msra.mxu0 0.0
        %915 = vmatprep.subr.mxu0 0.0
        %916 = vmatpush1.msra.mxu0 0.0
        %917 = vmatprep.subr.mxu0 0.0
        %918 = vmatpush1.msra.mxu0 0.0
        %919 = vmatprep.subr.mxu0 0.0
        %920 = vmatpush1.msra.mxu0 0.0
        %921 = vmatprep.subr.mxu0 0.0
        %922 = vmatpush1.msra.mxu0 0.0
        %923 = vmatprep.subr.mxu0 0.0
        %924 = vmatpush1.msra.mxu0 0.0
        %925 = vmatprep.subr.mxu0 0.0
        %926 = vmatpush1.msra.mxu0 0.0
        %927 = vmatprep.subr.mxu0 0.0
        %928 = vmatpush1.msra.mxu0 0.0
        %929 = vmatprep.subr.mxu0 0.0
        %930 = vmatpush1.msra.mxu0 0.0
        %931 = vmatprep.subr.mxu0 0.0
        %932 = vmatpush1.msra.mxu0 0.0
        %933 = vmatprep.subr.mxu0 0.0
        %934 = vmatpush1.msra.mxu0 0.0
        %935 = vmatprep.subr.mxu0 0.0
        %936 = vmatpush1.msra.mxu0 0.0
        %937 = vmatprep.subr.mxu0 0.0
        %938 = vmatpush1.msra.mxu0 0.0
        %939 = vmatprep.subr.mxu0 0.0
        %940 = vmatpush1.msra.mxu0 0.0
        %941 = vmatprep.subr.mxu0 0.0
        %942 = vmatpush1.msra.mxu0 0.0
        %943 = vmatprep.subr.mxu0 0.0
        %944 = vmatpush1.msra.mxu0 0.0
        %945 = vmatprep.subr.mxu0 0.0
        %946 = vmatpush1.msra.mxu0 0.0
        %947 = vmatprep.subr.mxu0 0.0
        %948 = vmatpush1.msra.mxu0 0.0
        %949 = vmatprep.subr.mxu0 0.0
        %950 = vmatpush1.msra.mxu0 0.0
        %951 = vmatprep.subr.mxu0 0.0
        %952 = vmatpush1.msra.mxu0 0.0
        %953 = vmatprep.subr.mxu0 0.0
        %954 = vmatpush1.msra.mxu0 0.0
        %955 = vmatprep.subr.mxu0 0.0
        %956 = vmatpush1.msra.mxu0 0.0
        %957 = vmatprep.subr.mxu0 0.0
        %958 = vmatpush1.msra.mxu0 0.0
        %959 = vmatprep.subr.mxu0 0.0
        %960 = vmatpush1.msra.mxu0 0.0
        %961 = vmatprep.subr.mxu0 0.0
        %962 = vmatpush1.msra.mxu0 0.0
        %963 = vmatprep.subr.mxu0 0.0
        %964 = vmatpush1.msra.mxu0 0.0
        %965 = vmatprep.subr.mxu0 0.0
        %966 = vmatpush1.msra.mxu0 0.0
        %967 = vmatprep.subr.mxu0 0.0
        %968 = vmatpush1.msra.mxu0 0.0
        %969 = vmatprep.mubr.f32.mxu0 0.0
        %970 = vmatmul.mubr.f32.gmra.mrb[0].mxu0 %v903
        %v971 = vpop.f32.mrb[0].mxu0
        %v972 = vadd.f32 0.0, %v971
        %v973 = vpop.f32.mrb[0].mxu0
        %974 = vdwg.mxu0
        %975 = vrot.lane.b32.xlu0 %v386, 64
        %v976 = vpop.permute.xlu0 %975
        %v979 = vsel %vm389, %v746, 0
        %981 = vmatprep.subr.mxu0 0.0
        %982 = vmatpush1.msra.mxu0 %v976
        %983 = vmatprep.subr.mxu0 0.0
        %984 = vmatpush1.msra.mxu0 0.0
        %985 = vmatprep.subr.mxu0 0.0
        %986 = vmatpush1.msra.mxu0 0.0
        %987 = vmatprep.subr.mxu0 0.0
        %988 = vmatpush1.msra.mxu0 0.0
        %989 = vmatprep.subr.mxu0 0.0
        %990 = vmatpush1.msra.mxu0 0.0
        %991 = vmatprep.subr.mxu0 0.0
        %992 = vmatpush1.msra.mxu0 0.0
        %993 = vmatprep.subr.mxu0 0.0
        %994 = vmatpush1.msra.mxu0 0.0
        %995 = vmatprep.subr.mxu0 0.0
        %996 = vmatpush1.msra.mxu0 0.0
        %997 = vmatprep.subr.mxu0 0.0
        %998 = vmatpush1.msra.mxu0 0.0
        %999 = vmatprep.subr.mxu0 0.0
        %1000 = vmatpush1.msra.mxu0 0.0
        %1001 = vmatprep.subr.mxu0 0.0
        %1002 = vmatpush1.msra.mxu0 0.0
        %1003 = vmatprep.subr.mxu0 0.0
        %1004 = vmatpush1.msra.mxu0 0.0
        %1005 = vmatprep.subr.mxu0 0.0
        %1006 = vmatpush1.msra.mxu0 0.0
        %1007 = vmatprep.subr.mxu0 0.0
        %1008 = vmatpush1.msra.mxu0 0.0
        %1009 = vmatprep.subr.mxu0 0.0
        %1010 = vmatpush1.msra.mxu0 0.0
        %1011 = vmatprep.subr.mxu0 0.0
        %1012 = vmatpush1.msra.mxu0 0.0
        %1013 = vmatprep.subr.mxu0 0.0
        %1014 = vmatpush1.msra.mxu0 0.0
        %1015 = vmatprep.subr.mxu0 0.0
        %1016 = vmatpush1.msra.mxu0 0.0
        %1017 = vmatprep.subr.mxu0 0.0
        %1018 = vmatpush1.msra.mxu0 0.0
        %1019 = vmatprep.subr.mxu0 0.0
        %1020 = vmatpush1.msra.mxu0 0.0
        %1021 = vmatprep.subr.mxu0 0.0
        %1022 = vmatpush1.msra.mxu0 0.0
        %1023 = vmatprep.subr.mxu0 0.0
        %1024 = vmatpush1.msra.mxu0 0.0
        %1025 = vmatprep.subr.mxu0 0.0
        %1026 = vmatpush1.msra.mxu0 0.0
        %1027 = vmatprep.subr.mxu0 0.0
        %1028 = vmatpush1.msra.mxu0 0.0
        %1029 = vmatprep.subr.mxu0 0.0
        %1030 = vmatpush1.msra.mxu0 0.0
        %1031 = vmatprep.subr.mxu0 0.0
        %1032 = vmatpush1.msra.mxu0 0.0
        %1033 = vmatprep.subr.mxu0 0.0
        %1034 = vmatpush1.msra.mxu0 0.0
        %1035 = vmatprep.subr.mxu0 0.0
        %1036 = vmatpush1.msra.mxu0 0.0
        %1037 = vmatprep.subr.mxu0 0.0
        %1038 = vmatpush1.msra.mxu0 0.0
        %1039 = vmatprep.subr.mxu0 0.0
        %1040 = vmatpush1.msra.mxu0 0.0
        %1041 = vmatprep.subr.mxu0 0.0
        %1042 = vmatpush1.msra.mxu0 0.0
        %1043 = vmatprep.subr.mxu0 0.0
        %1044 = vmatpush1.msra.mxu0 0.0
        %1045 = vmatprep.mubr.f32.mxu0 0.0
        %1046 = vmatmul.mubr.f32.gmra.mrb[0].mxu0 %v979
        %v1047 = vpop.f32.mrb[0].mxu0
        %v1048 = vadd.f32 0.0, %v1047
        %v1049 = vpop.f32.mrb[0].mxu0
        %1050 = vdwg.mxu0
        %1051 = vst.msk [vmem:[#allocation2] sm:$0xff] %vm389, %v820
        %1053 = vrot.lane.b32.xlu0 %v896, 8
        %v1054 = vpop.permute.xlu0 %1053
        %vm1056 = vcmask 130112
        %1057 = vst.msk [vmem:[#allocation2] sm:$0xff] %vm1056, %v1054
        %1059 = vrot.lane.b32.xlu0 %v972, 16
        %v1060 = vpop.permute.xlu0 %1059
        %vm1062 = vcmask 195712
        %1063 = vst.msk [vmem:[#allocation2] sm:$0xff] %vm1062, %v1060
        %1065 = vrot.lane.b32.xlu0 %v1048, 24
        %v1066 = vpop.permute.xlu0 %1065
        %vm1068 = vcmask 261312
        %1069 = vst.msk [vmem:[#allocation2] sm:$0xff] %vm1068, %v1066
        %v1070 = vld [vmem:[#allocation2] sm:$0xff]
        %v1071 = vld [vmem:[#allocation9] sm:$0xff]
        %v1072 = vld [vmem:[#allocation9 + $0x8] sm:$0xff]
        %v1073 = vld [vmem:[#allocation9 + $0x10] sm:$0xff]
        %v1074 = vld [vmem:[#allocation9 + $0x18] sm:$0xff]
        %v1075 = vld [vmem:[#allocation11] sm:$0x1]
        %v1077 = vlaneseq
        %v1078 = vshrl.u32 %v1077, 7
        %v1079 = vsub.s32 0, %v1078
        %v1080 = vrot.slane %v1075, %v1079
        %v1083 = vsel %vm306, %v1070, 0
        %1085 = vmatprep.subr.mxu0 0.0
        %1086 = vmatpush1.msra.mxu0 %v1071
        %1087 = vmatprep.subr.mxu0 0.0
        %1088 = vmatpush1.msra.mxu0 %v1072
        %1089 = vmatprep.subr.mxu0 0.0
        %1090 = vmatpush1.msra.mxu0 %v1073
        %1091 = vmatprep.subr.mxu0 0.0
        %1092 = vmatpush1.msra.mxu0 %v1074
        %1093 = vmatprep.subr.mxu0 0.0
        %1094 = vmatpush1.msra.mxu0 0.0
        %1095 = vmatprep.subr.mxu0 0.0
        %1096 = vmatpush1.msra.mxu0 0.0
        %1097 = vmatprep.subr.mxu0 0.0
        %1098 = vmatpush1.msra.mxu0 0.0
        %1099 = vmatprep.subr.mxu0 0.0
        %1100 = vmatpush1.msra.mxu0 0.0
        %1101 = vmatprep.subr.mxu0 0.0
        %1102 = vmatpush1.msra.mxu0 0.0
        %1103 = vmatprep.subr.mxu0 0.0
        %1104 = vmatpush1.msra.mxu0 0.0
        %1105 = vmatprep.subr.mxu0 0.0
        %1106 = vmatpush1.msra.mxu0 0.0
        %1107 = vmatprep.subr.mxu0 0.0
        %1108 = vmatpush1.msra.mxu0 0.0
        %1109 = vmatprep.subr.mxu0 0.0
        %1110 = vmatpush1.msra.mxu0 0.0
        %1111 = vmatprep.subr.mxu0 0.0
        %1112 = vmatpush1.msra.mxu0 0.0
        %1113 = vmatprep.subr.mxu0 0.0
        %1114 = vmatpush1.msra.mxu0 0.0
        %1115 = vmatprep.subr.mxu0 0.0
        %1116 = vmatpush1.msra.mxu0 0.0
        %1117 = vmatprep.subr.mxu0 0.0
        %1118 = vmatpush1.msra.mxu0 0.0
        %1119 = vmatprep.subr.mxu0 0.0
        %1120 = vmatpush1.msra.mxu0 0.0
        %1121 = vmatprep.subr.mxu0 0.0
        %1122 = vmatpush1.msra.mxu0 0.0
        %1123 = vmatprep.subr.mxu0 0.0
        %1124 = vmatpush1.msra.mxu0 0.0
        %1125 = vmatprep.subr.mxu0 0.0
        %1126 = vmatpush1.msra.mxu0 0.0
        %1127 = vmatprep.subr.mxu0 0.0
        %1128 = vmatpush1.msra.mxu0 0.0
        %1129 = vmatprep.subr.mxu0 0.0
        %1130 = vmatpush1.msra.mxu0 0.0
        %1131 = vmatprep.subr.mxu0 0.0
        %1132 = vmatpush1.msra.mxu0 0.0
        %1133 = vmatprep.subr.mxu0 0.0
        %1134 = vmatpush1.msra.mxu0 0.0
        %1135 = vmatprep.subr.mxu0 0.0
        %1136 = vmatpush1.msra.mxu0 0.0
        %1137 = vmatprep.subr.mxu0 0.0
        %1138 = vmatpush1.msra.mxu0 0.0
        %1139 = vmatprep.subr.mxu0 0.0
        %1140 = vmatpush1.msra.mxu0 0.0
        %1141 = vmatprep.subr.mxu0 0.0
        %1142 = vmatpush1.msra.mxu0 0.0
        %1143 = vmatprep.subr.mxu0 0.0
        %1144 = vmatpush1.msra.mxu0 0.0
        %1145 = vmatprep.subr.mxu0 0.0
        %1146 = vmatpush1.msra.mxu0 0.0
        %1147 = vmatprep.subr.mxu0 0.0
        %1148 = vmatpush1.msra.mxu0 0.0
        %1149 = vmatprep.mubr.f32.mxu0 0.0
        %1150 = vmatmul.mubr.f32.gmra.mrb[0].mxu0 %v1083
        %v1151 = vpop.f32.mrb[0].mxu0
        %v1152 = vadd.f32 %v1080, %v1151
        %v1153 = vpop.f32.mrb[0].mxu0
        %1154 = vdwg.mxu0
        %1155 = vst.msk [vmem:[%s293] sm:$0xff] %vm306, %v1152
        %s1156 = sand.u32 %s142, 1
        %s1157 = scalar_lea.sflag [#allocation5], %s1156
        %s1158 = sand.u32 %s142, 1
        %s1159 = smul.addr %s1158, 8
        %s1160 = scalar_lea.vmem [#allocation12], %s1159
        // Predicated region
        $region61: #{tpu_custom_call.1} parent=39 // pred_check
          %p1161 = pneg %p152
        $region62: #{tpu_custom_call.1} parent=39 // pred_check_branch
          %1163 = sbr.rel (%p1161) target = $region64
        $region63: #{tpu_custom_call.1} parent=39 // pred_region
          %s1165 = ssub.s32 128, 128
          %1166 = vsyncadd %s1157, %s1165
          %s1167 = smul.addr %s24, 128
          %s1168 = scalar_lea.hbm %s5, %s1167
          %s1170 = sshll.u32 %s1160, 4
          %s1171 = int_to_ptr.vmem [resolvable:$true] %s1170
          %1173 = dma.vmem_to_hbm [thread:$0]  %s1171, 128, %s1168, %s1157
        $region64: #{tpu_custom_call.1} parent=39 // pred_fallthru
          _
      $region40: #{tpu_custom_call.1} parent=5 // pred_fallthru
        _
      %p1174 = scmp.le.s32.totalorder 2, %s19
      // Predicated region
      $region65: #{tpu_custom_call.1} parent=5 // pred_check
        %p1175 = pneg %p1174
      $region66: #{tpu_custom_call.1} parent=5 // pred_check_branch
        %1177 = sbr.rel (%p1175) target = $region68
      $region67: #{tpu_custom_call.1} parent=5 // pred_region
        %s1178 = ssub.s32 %s19, 2
        // Predicated region
        $region69: #{tpu_custom_call.1} parent=67 // pred_check
          %p1179 = pneg %p158
        $region70: #{tpu_custom_call.1} parent=67 // pred_check_branch
          %1181 = sbr.rel (%p1179) target = $region72
        $region71: #{tpu_custom_call.1} parent=67 // pred_region
          %s1182 = sand.u32 %s143, 1
          %s1183 = scalar_lea.sflag [#allocation5], %s1182
          %s1184 = sand.u32 %s143, 1
          %s1185 = smul.addr %s1184, 8
          %s1186 = scalar_lea.vmem [#allocation12], %s1185
          %1187 = dma.done %s1183, 128
        $region72: #{tpu_custom_call.1} parent=67 // pred_fallthru
          _
      $region68: #{tpu_custom_call.1} parent=5 // pred_fallthru
        _
    $region6: #{tpu_custom_call.1} parent=1 // loop_footer
      %s23 = sadd.s32 1, %s19
    $region7: #{tpu_custom_call.1} parent=1 // loop_footer_branch
      %18 = sbr.rel target = $region3
    $region8: #{tpu_custom_call.1} parent=1 // loop_exit
      _
    %1188 = vsyncpa [#allocation4], 1
    %s1189 = scalar_lea.sflag [#allocation4], 1
    %1190 = vsyncpa %s1189, 1
    %1191 = vsyncpa [#allocation7], 1
    %1192 = vsyncpa [#allocation10], 1
    %1193 = vsyncpa [#allocation5], 1
    %s1194 = scalar_lea.sflag [#allocation5], 1
    %1195 = vsyncpa %s1194, 1

</llo_original>
